<compile_context>
chip_gen: v6e
topology: v6e:2x2x1
jax: 0.10.0
libtpu: 0.0.40
codegen_flags: <defaults>
</compile_context>

<pallas_src>
import math

import jax
import jax.numpy as jnp
from jax.experimental import pallas as pl
from jax.experimental.pallas import tpu as pltpu


def commnet_kernel(x_ref, w1_ref, b1_ref, t_ref, w2_ref, b2_ref, out_ref):
    """x_ref: (N, tile_b, D_obs) bf16, t_ref: (N, N) f32 in SMEM,
    out_ref: (N, tile_b, A_pad) f32."""
    n = x_ref.shape[0]
    w1 = w1_ref[...]            # (D_obs, HX)  bf16, VMEM-resident
    b1 = b1_ref[...]            # (1, HX)      f32
    w2 = w2_ref[...]            # (HX, A_pad)  bf16, VMEM-resident
    b2 = b2_ref[...]            # (1, A_pad)   f32

    # ---- encode_net: Linear (bf16 MXU, f32 accumulate) + ReLU, per agent ----
    h = []
    for j in range(n):
        hj = jnp.dot(x_ref[j], w1, preferred_element_type=jnp.float32)
        h.append(jnp.maximum(hj + b1, 0.0))                 # (tile_b, HX) f32

    # ---- comm_net (k=1): N x N scalar*vector accumulate on the VPU ----
    # (T*J) scalars come from SMEM; then Tanh (EUP) and decode_net (bf16 MXU).
    for i in range(n):
        mix = t_ref[i, 0] * h[0]
        for j in range(1, n):
            mix = mix + t_ref[i, j] * h[j]
        mix = jnp.tanh(mix)                                 # f32 (tile_b, HX)
        qi = jnp.dot(mix.astype(w2.dtype), w2,
                     preferred_element_type=jnp.float32)    # (tile_b, A_pad)
        out_ref[i] = (qi + b2).astype(out_ref.dtype)


def _num_tensorcores():
    """Defensive core-count query; falls back to 1 (single-TC tiling)."""
    try:
        info = pltpu.get_tpu_info()
        for name in ("num_cores", "core_count", "num_tensorcores",
                     "tensorcore_count"):
            v = getattr(info, name, None)
            if isinstance(v, int) and v > 0:
                return v
    except Exception:
        pass
    return 1


def _choose_tile_b(batch, n_agents, target_rows=1024):
    """Batch samples per tile: multiple of 16 (bf16 sublane packing), sized so
    tile_b * N ~ target_rows; keep >= 2 grid blocks only when a second
    TensorCore exists and the batch is big enough."""
    unit = 16
    b_units = -(-batch // unit)                         # ceil(batch / unit)
    max_units = max(1, target_rows // (unit * n_agents))
    if _num_tensorcores() >= 2 and b_units >= 2:
        max_units = min(max_units, max(1, b_units // 2))
    tile_b = min(b_units, max_units) * unit
    n_tiles = -(-batch // tile_b)
    return tile_b, n_tiles


@jax.jit
def commnet_forward(obs, w1, b1, t_param, w2, b2):
    B, N, D_obs = obs.shape
    HX = w1.shape[1]
    A = w2.shape[1]
    A_pad = ((A + 127) // 128) * 128                    # lane-dense output

    # ---- constant prep hoisted out of the kernel ----
    # J is symmetric, so (T.T * J).T == T * J : the module's transposes cancel.
    eye = jnp.eye(N, dtype=jnp.float32)
    j_mat = (1.0 - eye) * (1.0 / (N - 1)) + eye
    t_eff = t_param.astype(jnp.float32) * j_mat         # (N, N), goes to SMEM

    tile_b, n_tiles = _choose_tile_b(B, N)
    B_pad = n_tiles * tile_b

    # Agent-major layout: (N, B_pad, D_obs), bf16 for the MXU / halved DMA.
    x = jnp.transpose(obs, (1, 0, 2)).astype(jnp.bfloat16)
    if B_pad != B:
        x = jnp.pad(x, ((0, 0), (0, B_pad - B), (0, 0)))

    w1_b = w1.astype(jnp.bfloat16)
    b1_f = b1.astype(jnp.float32)
    w2_b = jnp.pad(w2, ((0, 0), (0, A_pad - A))).astype(jnp.bfloat16)
    b2_p = jnp.pad(b2.astype(jnp.float32), ((0, 0), (0, A_pad - A)))

    grid_spec = pltpu.PrefetchScalarGridSpec(
        num_scalar_prefetch=0,
        grid=(n_tiles,),
        in_specs=[
            pl.BlockSpec((N, tile_b, D_obs), lambda i: (0, i, 0)),   # obs tile
            pl.BlockSpec((D_obs, HX), lambda i: (0, 0)),             # W1 (resident)
            pl.BlockSpec((1, HX), lambda i: (0, 0)),                 # b1 (resident)
            pl.BlockSpec(memory_space=pltpu.MemorySpace.SMEM),       # T*J scalars
            pl.BlockSpec((HX, A_pad), lambda i: (0, 0)),             # W2 (resident)
            pl.BlockSpec((1, A_pad), lambda i: (0, 0)),              # b2 (resident)
        ],
        out_specs=pl.BlockSpec((N, tile_b, A_pad), lambda i: (0, i, 0)),
    )

    flops = 2 * B_pad * N * (D_obs * HX + N * HX + HX * A_pad)
    transcendentals = B_pad * N * HX
    bytes_accessed = (x.size * 2 + w1_b.size * 2 + b1_f.size * 4 + t_eff.size * 4
                      + w2_b.size * 2 + b2_p.size * 4 + N * B_pad * A_pad * 4)

    q = pl.pallas_call(
        commnet_kernel,
        out_shape=jax.ShapeDtypeStruct((N, B_pad, A_pad), jnp.float32),
        grid_spec=grid_spec,
        compiler_params=pltpu.CompilerParams(
            dimension_semantics=("parallel",)),
        cost_estimate=pl.CostEstimate(
            flops=int(flops),
            transcendentals=int(transcendentals),
            bytes_accessed=int(bytes_accessed)),
    )(x, w1_b, b1_f, t_eff, w2_b, b2_p)

    # (N, B_pad, A_pad) -> (B, N, A)
    return jnp.transpose(q[:, :B, :A], (1, 0, 2))


def reference_forward(obs, w1, b1, t_param, w2, b2):
    """Pure-JAX reference matching the PyTorch module semantics."""
    n = obs.shape[1]
    hidden = jax.nn.relu(jnp.einsum("bnd,dh->bnh", obs, w1) + b1[0])
    eye = jnp.eye(n, dtype=jnp.float32)
    j_mat = (1.0 - eye) * (1.0 / (n - 1)) + eye
    t_norm = t_param.T * j_mat
    # CommLayer: permute -> (B, HX, N) @ T_norm -> permute back, then Tanh.
    h_perm = jnp.transpose(hidden, (0, 2, 1))
    h_next = jnp.matmul(h_perm, t_norm)
    hidden = jnp.tanh(jnp.transpose(h_next, (0, 2, 1)))
    return jnp.einsum("bnh,ha->bna", hidden, w2) + b2[0]


if __name__ == "__main__":
    # Small shapes implied by the module:
    #   num_agents = 4, n_obs = 16, hx_size = 64, n_actions = 8, batch = 2
    B, N, D_OBS, HX, A = 2, 4, 16, 64, 8

    key = jax.random.PRNGKey(0)
    k_obs, k_w1, k_b1, k_w2, k_b2 = jax.random.split(key, 5)

    obs = jax.random.normal(k_obs, (B, N, D_OBS), dtype=jnp.float32)

    # Deterministic parameter init (synthetic; matches module shapes).
    w1 = 0.1 * jax.random.normal(k_w1, (D_OBS, HX), dtype=jnp.float32)
    b1 = 0.1 * jax.random.normal(k_b1, (1, HX), dtype=jnp.float32)
    # CommLayer.__init__: T = zeros(N, N) + eye(N)
    t_param = jnp.eye(N, dtype=jnp.float32)
    w2 = 0.1 * jax.random.normal(k_w2, (HX, A), dtype=jnp.float32)
    b2 = 0.1 * jax.random.normal(k_b2, (1, A), dtype=jnp.float32)

    q = commnet_forward(obs, w1, b1, t_param, w2, b2)
    q = jax.block_until_ready(q)

    q_ref = reference_forward(obs, w1, b1, t_param, w2, b2)
    assert q.shape == (B, N, A)
    # bf16 MXU operands (f32 accumulation) -> looser tolerance vs f32 reference.
    assert jnp.allclose(q, q_ref, atol=2e-2, rtol=2e-2), "mismatch vs reference"

    print("KERNEL_OK")
</pallas_src>

<mosaic_0001>
module attributes {stable_mosaic.version = 11 : i64} {
  func.func @commnet_kernel(%arg0: i32, %arg1: memref<4x16x16xbf16, #tpu.memory_space<vmem>>, %arg2: memref<16x64xbf16, #tpu.memory_space<vmem>>, %arg3: memref<1x64xf32, #tpu.memory_space<vmem>>, %arg4: memref<4x4xf32, #tpu.memory_space<smem>>, %arg5: memref<64x128xbf16, #tpu.memory_space<vmem>>, %arg6: memref<1x128xf32, #tpu.memory_space<vmem>>, %arg7: memref<4x16x128xf32, #tpu.memory_space<vmem>>) attributes {dimension_semantics = [#tpu.dimension_semantics<parallel>], iteration_bounds = array<i64: 1>, scalar_prefetch = 0 : i64, scratch_operands = 0 : i64, tpu.core_type = #tpu.core_type<tc>, window_params = [{transform_indices = @transform_0, window_bounds = array<i64: 4, 16, 16>}, {pipeline_mode = #tpu.pipeline_mode<synchronous>, transform_indices = @transform_1, window_bounds = array<i64: 16, 64>}, {pipeline_mode = #tpu.pipeline_mode<synchronous>, transform_indices = @transform_2, window_bounds = array<i64: 1, 64>}, {transform_indices = @transform_3, window_bounds = array<i64: 4, 4>}, {pipeline_mode = #tpu.pipeline_mode<synchronous>, transform_indices = @transform_4, window_bounds = array<i64: 64, 128>}, {pipeline_mode = #tpu.pipeline_mode<synchronous>, transform_indices = @transform_5, window_bounds = array<i64: 1, 128>}, {transform_indices = @transform_6, window_bounds = array<i64: 4, 16, 128>}]} {
    %c0 = arith.constant 0 : index
    %c0_0 = arith.constant 0 : index
    %0 = vector.load %arg2[%c0, %c0_0] : memref<16x64xbf16, #tpu.memory_space<vmem>>, vector<16x64xbf16>
    %c0_1 = arith.constant 0 : index
    %c0_2 = arith.constant 0 : index
    %1 = vector.load %arg3[%c0_1, %c0_2] : memref<1x64xf32, #tpu.memory_space<vmem>>, vector<1x64xf32>
    %c0_3 = arith.constant 0 : index
    %c0_4 = arith.constant 0 : index
    %2 = vector.load %arg5[%c0_3, %c0_4] : memref<64x128xbf16, #tpu.memory_space<vmem>>, vector<64x128xbf16>
    %c0_5 = arith.constant 0 : index
    %c0_6 = arith.constant 0 : index
    %3 = vector.load %arg6[%c0_5, %c0_6] : memref<1x128xf32, #tpu.memory_space<vmem>>, vector<1x128xf32>
    %c0_7 = arith.constant 0 : index
    %c0_8 = arith.constant 0 : index
    %c0_9 = arith.constant 0 : index
    %4 = vector.load %arg1[%c0_7, %c0_8, %c0_9] : memref<4x16x16xbf16, #tpu.memory_space<vmem>>, vector<1x16x16xbf16>
    %5 = vector.shape_cast %4 : vector<1x16x16xbf16> to vector<16x16xbf16>
    %cst = arith.constant dense<0.000000e+00> : vector<16x64xf32>
    %6 = tpu.matmul %5, %0, %cst {dimension_numbers = #tpu.dot_dimension_numbers<[1], [0], [0], [1], [0, 0, 1, 1], [], []>} : vector<16x16xbf16>, vector<16x64xbf16>, vector<16x64xf32> -> vector<16x64xf32>
    %7 = vector.broadcast %1 : vector<1x64xf32> to vector<16x64xf32>
    %8 = arith.addf %6, %7 : vector<16x64xf32>
    %cst_10 = arith.constant 0.000000e+00 : f32
    %9 = vector.broadcast %cst_10 : f32 to vector<16x64xf32>
    %10 = arith.maximumf %8, %9 : vector<16x64xf32>
    %c1 = arith.constant 1 : index
    %c0_11 = arith.constant 0 : index
    %c0_12 = arith.constant 0 : index
    %11 = vector.load %arg1[%c1, %c0_11, %c0_12] : memref<4x16x16xbf16, #tpu.memory_space<vmem>>, vector<1x16x16xbf16>
    %12 = vector.shape_cast %11 : vector<1x16x16xbf16> to vector<16x16xbf16>
    %cst_13 = arith.constant dense<0.000000e+00> : vector<16x64xf32>
    %13 = tpu.matmul %12, %0, %cst_13 {dimension_numbers = #tpu.dot_dimension_numbers<[1], [0], [0], [1], [0, 0, 1, 1], [], []>} : vector<16x16xbf16>, vector<16x64xbf16>, vector<16x64xf32> -> vector<16x64xf32>
    %14 = vector.broadcast %1 : vector<1x64xf32> to vector<16x64xf32>
    %15 = arith.addf %13, %14 : vector<16x64xf32>
    %cst_14 = arith.constant 0.000000e+00 : f32
    %16 = vector.broadcast %cst_14 : f32 to vector<16x64xf32>
    %17 = arith.maximumf %15, %16 : vector<16x64xf32>
    %c2 = arith.constant 2 : index
    %c0_15 = arith.constant 0 : index
    %c0_16 = arith.constant 0 : index
    %18 = vector.load %arg1[%c2, %c0_15, %c0_16] : memref<4x16x16xbf16, #tpu.memory_space<vmem>>, vector<1x16x16xbf16>
    %19 = vector.shape_cast %18 : vector<1x16x16xbf16> to vector<16x16xbf16>
    %cst_17 = arith.constant dense<0.000000e+00> : vector<16x64xf32>
    %20 = tpu.matmul %19, %0, %cst_17 {dimension_numbers = #tpu.dot_dimension_numbers<[1], [0], [0], [1], [0, 0, 1, 1], [], []>} : vector<16x16xbf16>, vector<16x64xbf16>, vector<16x64xf32> -> vector<16x64xf32>
    %21 = vector.broadcast %1 : vector<1x64xf32> to vector<16x64xf32>
    %22 = arith.addf %20, %21 : vector<16x64xf32>
    %cst_18 = arith.constant 0.000000e+00 : f32
    %23 = vector.broadcast %cst_18 : f32 to vector<16x64xf32>
    %24 = arith.maximumf %22, %23 : vector<16x64xf32>
    %c3 = arith.constant 3 : index
    %c0_19 = arith.constant 0 : index
    %c0_20 = arith.constant 0 : index
    %25 = vector.load %arg1[%c3, %c0_19, %c0_20] : memref<4x16x16xbf16, #tpu.memory_space<vmem>>, vector<1x16x16xbf16>
    %26 = vector.shape_cast %25 : vector<1x16x16xbf16> to vector<16x16xbf16>
    %cst_21 = arith.constant dense<0.000000e+00> : vector<16x64xf32>
    %27 = tpu.matmul %26, %0, %cst_21 {dimension_numbers = #tpu.dot_dimension_numbers<[1], [0], [0], [1], [0, 0, 1, 1], [], []>} : vector<16x16xbf16>, vector<16x64xbf16>, vector<16x64xf32> -> vector<16x64xf32>
    %28 = vector.broadcast %1 : vector<1x64xf32> to vector<16x64xf32>
    %29 = arith.addf %27, %28 : vector<16x64xf32>
    %cst_22 = arith.constant 0.000000e+00 : f32
    %30 = vector.broadcast %cst_22 : f32 to vector<16x64xf32>
    %31 = arith.maximumf %29, %30 : vector<16x64xf32>
    %c0_23 = arith.constant 0 : index
    %c0_24 = arith.constant 0 : index
    %32 = memref.load %arg4[%c0_23, %c0_24] : memref<4x4xf32, #tpu.memory_space<smem>>
    %33 = vector.broadcast %32 : f32 to vector<16x64xf32>
    %34 = arith.mulf %33, %10 : vector<16x64xf32>
    %c0_25 = arith.constant 0 : index
    %c1_26 = arith.constant 1 : index
    %35 = memref.load %arg4[%c0_25, %c1_26] : memref<4x4xf32, #tpu.memory_space<smem>>
    %36 = vector.broadcast %35 : f32 to vector<16x64xf32>
    %37 = arith.mulf %36, %17 : vector<16x64xf32>
    %38 = arith.addf %34, %37 : vector<16x64xf32>
    %c0_27 = arith.constant 0 : index
    %c2_28 = arith.constant 2 : index
    %39 = memref.load %arg4[%c0_27, %c2_28] : memref<4x4xf32, #tpu.memory_space<smem>>
    %40 = vector.broadcast %39 : f32 to vector<16x64xf32>
    %41 = arith.mulf %40, %24 : vector<16x64xf32>
    %42 = arith.addf %38, %41 : vector<16x64xf32>
    %c0_29 = arith.constant 0 : index
    %c3_30 = arith.constant 3 : index
    %43 = memref.load %arg4[%c0_29, %c3_30] : memref<4x4xf32, #tpu.memory_space<smem>>
    %44 = vector.broadcast %43 : f32 to vector<16x64xf32>
    %45 = arith.mulf %44, %31 : vector<16x64xf32>
    %46 = arith.addf %42, %45 : vector<16x64xf32>
    %47 = math.tanh %46 : vector<16x64xf32>
    %48 = arith.truncf %47 : vector<16x64xf32> to vector<16x64xbf16>
    %cst_31 = arith.constant dense<0.000000e+00> : vector<16x128xf32>
    %49 = tpu.matmul %48, %2, %cst_31 {dimension_numbers = #tpu.dot_dimension_numbers<[1], [0], [0], [1], [0, 0, 1, 1], [], []>} : vector<16x64xbf16>, vector<64x128xbf16>, vector<16x128xf32> -> vector<16x128xf32>
    %50 = vector.broadcast %3 : vector<1x128xf32> to vector<16x128xf32>
    %51 = arith.addf %49, %50 : vector<16x128xf32>
    %c0_32 = arith.constant 0 : index
    %c0_33 = arith.constant 0 : index
    %c0_34 = arith.constant 0 : index
    %52 = vector.load %arg7[%c0_32, %c0_33, %c0_34] : memref<4x16x128xf32, #tpu.memory_space<vmem>>, vector<1x16x128xf32>
    %53 = vector.shape_cast %52 : vector<1x16x128xf32> to vector<16x128xf32>
    %54 = vector.shape_cast %51 : vector<16x128xf32> to vector<1x16x128xf32>
    tpu.vector_store %arg7[%c0_32, %c0_33, %c0_34], %54 {strides = array<i32>} : memref<4x16x128xf32, #tpu.memory_space<vmem>>, vector<1x16x128xf32>,
    %c1_35 = arith.constant 1 : index
    %c0_36 = arith.constant 0 : index
    %55 = memref.load %arg4[%c1_35, %c0_36] : memref<4x4xf32, #tpu.memory_space<smem>>
    %56 = vector.broadcast %55 : f32 to vector<16x64xf32>
    %57 = arith.mulf %56, %10 : vector<16x64xf32>
    %c1_37 = arith.constant 1 : index
    %c1_38 = arith.constant 1 : index
    %58 = memref.load %arg4[%c1_37, %c1_38] : memref<4x4xf32, #tpu.memory_space<smem>>
    %59 = vector.broadcast %58 : f32 to vector<16x64xf32>
    %60 = arith.mulf %59, %17 : vector<16x64xf32>
    %61 = arith.addf %57, %60 : vector<16x64xf32>
    %c1_39 = arith.constant 1 : index
    %c2_40 = arith.constant 2 : index
    %62 = memref.load %arg4[%c1_39, %c2_40] : memref<4x4xf32, #tpu.memory_space<smem>>
    %63 = vector.broadcast %62 : f32 to vector<16x64xf32>
    %64 = arith.mulf %63, %24 : vector<16x64xf32>
    %65 = arith.addf %61, %64 : vector<16x64xf32>
    %c1_41 = arith.constant 1 : index
    %c3_42 = arith.constant 3 : index
    %66 = memref.load %arg4[%c1_41, %c3_42] : memref<4x4xf32, #tpu.memory_space<smem>>
    %67 = vector.broadcast %66 : f32 to vector<16x64xf32>
    %68 = arith.mulf %67, %31 : vector<16x64xf32>
    %69 = arith.addf %65, %68 : vector<16x64xf32>
    %70 = math.tanh %69 : vector<16x64xf32>
    %71 = arith.truncf %70 : vector<16x64xf32> to vector<16x64xbf16>
    %cst_43 = arith.constant dense<0.000000e+00> : vector<16x128xf32>
    %72 = tpu.matmul %71, %2, %cst_43 {dimension_numbers = #tpu.dot_dimension_numbers<[1], [0], [0], [1], [0, 0, 1, 1], [], []>} : vector<16x64xbf16>, vector<64x128xbf16>, vector<16x128xf32> -> vector<16x128xf32>
    %73 = vector.broadcast %3 : vector<1x128xf32> to vector<16x128xf32>
    %74 = arith.addf %72, %73 : vector<16x128xf32>
    %c1_44 = arith.constant 1 : index
    %c0_45 = arith.constant 0 : index
    %c0_46 = arith.constant 0 : index
    %75 = vector.load %arg7[%c1_44, %c0_45, %c0_46] : memref<4x16x128xf32, #tpu.memory_space<vmem>>, vector<1x16x128xf32>
    %76 = vector.shape_cast %75 : vector<1x16x128xf32> to vector<16x128xf32>
    %77 = vector.shape_cast %74 : vector<16x128xf32> to vector<1x16x128xf32>
    tpu.vector_store %arg7[%c1_44, %c0_45, %c0_46], %77 {strides = array<i32>} : memref<4x16x128xf32, #tpu.memory_space<vmem>>, vector<1x16x128xf32>,
    %c2_47 = arith.constant 2 : index
    %c0_48 = arith.constant 0 : index
    %78 = memref.load %arg4[%c2_47, %c0_48] : memref<4x4xf32, #tpu.memory_space<smem>>
    %79 = vector.broadcast %78 : f32 to vector<16x64xf32>
    %80 = arith.mulf %79, %10 : vector<16x64xf32>
    %c2_49 = arith.constant 2 : index
    %c1_50 = arith.constant 1 : index
    %81 = memref.load %arg4[%c2_49, %c1_50] : memref<4x4xf32, #tpu.memory_space<smem>>
    %82 = vector.broadcast %81 : f32 to vector<16x64xf32>
    %83 = arith.mulf %82, %17 : vector<16x64xf32>
    %84 = arith.addf %80, %83 : vector<16x64xf32>
    %c2_51 = arith.constant 2 : index
    %c2_52 = arith.constant 2 : index
    %85 = memref.load %arg4[%c2_51, %c2_52] : memref<4x4xf32, #tpu.memory_space<smem>>
    %86 = vector.broadcast %85 : f32 to vector<16x64xf32>
    %87 = arith.mulf %86, %24 : vector<16x64xf32>
    %88 = arith.addf %84, %87 : vector<16x64xf32>
    %c2_53 = arith.constant 2 : index
    %c3_54 = arith.constant 3 : index
    %89 = memref.load %arg4[%c2_53, %c3_54] : memref<4x4xf32, #tpu.memory_space<smem>>
    %90 = vector.broadcast %89 : f32 to vector<16x64xf32>
    %91 = arith.mulf %90, %31 : vector<16x64xf32>
    %92 = arith.addf %88, %91 : vector<16x64xf32>
    %93 = math.tanh %92 : vector<16x64xf32>
    %94 = arith.truncf %93 : vector<16x64xf32> to vector<16x64xbf16>
    %cst_55 = arith.constant dense<0.000000e+00> : vector<16x128xf32>
    %95 = tpu.matmul %94, %2, %cst_55 {dimension_numbers = #tpu.dot_dimension_numbers<[1], [0], [0], [1], [0, 0, 1, 1], [], []>} : vector<16x64xbf16>, vector<64x128xbf16>, vector<16x128xf32> -> vector<16x128xf32>
    %96 = vector.broadcast %3 : vector<1x128xf32> to vector<16x128xf32>
    %97 = arith.addf %95, %96 : vector<16x128xf32>
    %c2_56 = arith.constant 2 : index
    %c0_57 = arith.constant 0 : index
    %c0_58 = arith.constant 0 : index
    %98 = vector.load %arg7[%c2_56, %c0_57, %c0_58] : memref<4x16x128xf32, #tpu.memory_space<vmem>>, vector<1x16x128xf32>
    %99 = vector.shape_cast %98 : vector<1x16x128xf32> to vector<16x128xf32>
    %100 = vector.shape_cast %97 : vector<16x128xf32> to vector<1x16x128xf32>
    tpu.vector_store %arg7[%c2_56, %c0_57, %c0_58], %100 {strides = array<i32>} : memref<4x16x128xf32, #tpu.memory_space<vmem>>, vector<1x16x128xf32>,
    %c3_59 = arith.constant 3 : index
    %c0_60 = arith.constant 0 : index
    %101 = memref.load %arg4[%c3_59, %c0_60] : memref<4x4xf32, #tpu.memory_space<smem>>
    %102 = vector.broadcast %101 : f32 to vector<16x64xf32>
    %103 = arith.mulf %102, %10 : vector<16x64xf32>
    %c3_61 = arith.constant 3 : index
    %c1_62 = arith.constant 1 : index
    %104 = memref.load %arg4[%c3_61, %c1_62] : memref<4x4xf32, #tpu.memory_space<smem>>
    %105 = vector.broadcast %104 : f32 to vector<16x64xf32>
    %106 = arith.mulf %105, %17 : vector<16x64xf32>
    %107 = arith.addf %103, %106 : vector<16x64xf32>
    %c3_63 = arith.constant 3 : index
    %c2_64 = arith.constant 2 : index
    %108 = memref.load %arg4[%c3_63, %c2_64] : memref<4x4xf32, #tpu.memory_space<smem>>
    %109 = vector.broadcast %108 : f32 to vector<16x64xf32>
    %110 = arith.mulf %109, %24 : vector<16x64xf32>
    %111 = arith.addf %107, %110 : vector<16x64xf32>
    %c3_65 = arith.constant 3 : index
    %c3_66 = arith.constant 3 : index
    %112 = memref.load %arg4[%c3_65, %c3_66] : memref<4x4xf32, #tpu.memory_space<smem>>
    %113 = vector.broadcast %112 : f32 to vector<16x64xf32>
    %114 = arith.mulf %113, %31 : vector<16x64xf32>
    %115 = arith.addf %111, %114 : vector<16x64xf32>
    %116 = math.tanh %115 : vector<16x64xf32>
    %117 = arith.truncf %116 : vector<16x64xf32> to vector<16x64xbf16>
    %cst_67 = arith.constant dense<0.000000e+00> : vector<16x128xf32>
    %118 = tpu.matmul %117, %2, %cst_67 {dimension_numbers = #tpu.dot_dimension_numbers<[1], [0], [0], [1], [0, 0, 1, 1], [], []>} : vector<16x64xbf16>, vector<64x128xbf16>, vector<16x128xf32> -> vector<16x128xf32>
    %119 = vector.broadcast %3 : vector<1x128xf32> to vector<16x128xf32>
    %120 = arith.addf %118, %119 : vector<16x128xf32>
    %c3_68 = arith.constant 3 : index
    %c0_69 = arith.constant 0 : index
    %c0_70 = arith.constant 0 : index
    %121 = vector.load %arg7[%c3_68, %c0_69, %c0_70] : memref<4x16x128xf32, #tpu.memory_space<vmem>>, vector<1x16x128xf32>
    %122 = vector.shape_cast %121 : vector<1x16x128xf32> to vector<16x128xf32>
    %123 = vector.shape_cast %120 : vector<16x128xf32> to vector<1x16x128xf32>
    tpu.vector_store %arg7[%c3_68, %c0_69, %c0_70], %123 {strides = array<i32>} : memref<4x16x128xf32, #tpu.memory_space<vmem>>, vector<1x16x128xf32>,
    return
  }
  func.func @transform_0(%arg0: i32) -> (i32, i32, i32) {
    %c0_i32 = arith.constant 0 : i32
    %c0_i32_0 = arith.constant 0 : i32
    %c0_i32_1 = arith.constant 0 : i32
    return %c0_i32, %arg0, %c0_i32_0 : i32, i32, i32
  }
  func.func @transform_1(%arg0: i32) -> (i32, i32) {
    %c0_i32 = arith.constant 0 : i32
    %c0_i32_0 = arith.constant 0 : i32
    %c0_i32_1 = arith.constant 0 : i32
    return %c0_i32, %c0_i32_0 : i32, i32
  }
  func.func @transform_2(%arg0: i32) -> (i32, i32) {
    %c0_i32 = arith.constant 0 : i32
    %c0_i32_0 = arith.constant 0 : i32
    %c0_i32_1 = arith.constant 0 : i32
    return %c0_i32, %c0_i32_0 : i32, i32
  }
  func.func @transform_3(%arg0: i32) -> (i32, i32) {
    %c0_i32 = arith.constant 0 : i32
    %c0_i32_0 = arith.constant 0 : i32
    %c0_i32_1 = arith.constant 0 : i32
    return %c0_i32, %c0_i32_0 : i32, i32
  }
  func.func @transform_4(%arg0: i32) -> (i32, i32) {
    %c0_i32 = arith.constant 0 : i32
    %c0_i32_0 = arith.constant 0 : i32
    %c0_i32_1 = arith.constant 0 : i32
    return %c0_i32, %c0_i32_0 : i32, i32
  }
  func.func @transform_5(%arg0: i32) -> (i32, i32) {
    %c0_i32 = arith.constant 0 : i32
    %c0_i32_0 = arith.constant 0 : i32
    %c0_i32_1 = arith.constant 0 : i32
    return %c0_i32, %c0_i32_0 : i32, i32
  }
  func.func @transform_6(%arg0: i32) -> (i32, i32, i32) {
    %c0_i32 = arith.constant 0 : i32
    %c0_i32_0 = arith.constant 0 : i32
    %c0_i32_1 = arith.constant 0 : i32
    return %c0_i32, %arg0, %c0_i32_0 : i32, i32, i32
  }
}

</mosaic_0001>

<llo_original>
// kernel: commnet_forward.1
$region0: #{commnet_forward.1}
  #allocation0 [shape = 'u32[]', space=smem, size = 0x4, offset = 0x4, fixed_abs, tag = 'smem constant byte address 0x4 - core index']
  #allocation1 [shape = 'u32[144,128]{1,0:T(1,128)}', space=vmem, size = 0x12000, scoped, tag = 'internal scratch']
  %s0 = inlined_call_operand.vmem [shape: bf16[4,16,16], index: 0, kind: input, shape index: {}]
  %s1 = inlined_call_operand.vmem [shape: bf16[16,64], index: 1, kind: input, shape index: {}]
  %s2 = inlined_call_operand.vmem [shape: f32[1,64], index: 2, kind: input, shape index: {}]
  %s3 = inlined_call_operand.vmem [shape: f32[4,4], index: 3, kind: input, shape index: {}]
  %s4 = inlined_call_operand.vmem [shape: bf16[64,128], index: 4, kind: input, shape index: {}]
  %s5 = inlined_call_operand.vmem [shape: f32[1,128], index: 5, kind: input, shape index: {}]
  %s6 = inlined_call_operand.vmem [shape: f32[4,16,128], index: 6, kind: output, shape index: {}]
  %s7 = sld [smem:[#allocation0]]
  $region38: #{commnet_forward.1} parent=0
    _
  %s9 = ssub.s32 1, %s7
  %s10 = scalar_select 0, %s9, %s7
  $region1: #{commnet_forward.1} parent=0
    #allocation2 [shape = 'u8[2048]{0}', space=smem, size = 0x800, scoped, tag = 'input window, operand 3, single buffered']
    #allocation3 [shape = 's32[1]{0}', space=sflag, size = 0x4, scoped, tag = 'scoped memory for commnet_forward.1']
    %11 = vsyncpa [#allocation3], 0
    // Predicated region
    $region2: #{commnet_forward.1} parent=1 // pred_check
      _
    $region3: #{commnet_forward.1} parent=1 // pred_check_branch
      %13 = sbr.rel (0) target = $region5
    $region4: #{commnet_forward.1} parent=1 // pred_region
      _
    $region5: #{commnet_forward.1} parent=1 // pred_fallthru
      _
    // Predicated region
    $region6: #{commnet_forward.1} parent=1 // pred_check
      _
    $region7: #{commnet_forward.1} parent=1 // pred_check_branch
      %15 = sbr.rel (0) target = $region9
    $region8: #{commnet_forward.1} parent=1 // pred_region
      _
    $region9: #{commnet_forward.1} parent=1 // pred_fallthru
      _
    // Predicated region
    $region10: #{commnet_forward.1} parent=1 // pred_check
      _
    $region11: #{commnet_forward.1} parent=1 // pred_check_branch
      %17 = sbr.rel (0) target = $region13
    $region12: #{commnet_forward.1} parent=1 // pred_region
      _
    $region13: #{commnet_forward.1} parent=1 // pred_fallthru
      _
    // Predicated region
    $region14: #{commnet_forward.1} parent=1 // pred_check
      _
    $region15: #{commnet_forward.1} parent=1 // pred_check_branch
      %19 = sbr.rel (0) target = $region17
    $region16: #{commnet_forward.1} parent=1 // pred_region
      %s21 = ssub.s32 64, 64
      %22 = vsyncadd [#allocation3], %s21
      %s24 = sshll.u32 %s3, 4
      %s25 = int_to_ptr.vmem [resolvable:$true] %s24
      %27 = dma.vmem_to_smem %s25, 64, [#allocation2], [#allocation3]
    $region17: #{commnet_forward.1} parent=1 // pred_fallthru
      _
    // Predicated region
    $region18: #{commnet_forward.1} parent=1 // pred_check
      _
    $region19: #{commnet_forward.1} parent=1 // pred_check_branch
      %29 = sbr.rel (0) target = $region21
    $region20: #{commnet_forward.1} parent=1 // pred_region
      _
    $region21: #{commnet_forward.1} parent=1 // pred_fallthru
      _
    // Predicated region
    $region22: #{commnet_forward.1} parent=1 // pred_check
      _
    $region23: #{commnet_forward.1} parent=1 // pred_check_branch
      %31 = sbr.rel (0) target = $region25
    $region24: #{commnet_forward.1} parent=1 // pred_region
      _
    $region25: #{commnet_forward.1} parent=1 // pred_fallthru
      _
    // Predicated region
    $region26: #{commnet_forward.1} parent=1 // pred_check
      _
    $region27: #{commnet_forward.1} parent=1 // pred_check_branch
      %33 = sbr.rel (0) target = $region29
    $region28: #{commnet_forward.1} parent=1 // pred_region
      %34 = dma.done [#allocation3], 64
    $region29: #{commnet_forward.1} parent=1 // pred_fallthru
      _
    %35 = sfence
    %v37 = vld [vmem:[%s1] sm:$0xf]
    %v38 = vld [vmem:[%s1 + $0x4] sm:$0xf]
    %v39 = vld [vmem:[%s2] sm:$0x1]
    %v40 = vld [vmem:[%s4] sm:$0xf]
    %v41 = vld [vmem:[%s4 + $0x4] sm:$0xf]
    %v42 = vld [vmem:[%s4 + $0x8] sm:$0xf]
    %v43 = vld [vmem:[%s4 + $0xc] sm:$0xf]
    %v44 = vld [vmem:[%s4 + $0x10] sm:$0xf]
    %v45 = vld [vmem:[%s4 + $0x14] sm:$0xf]
    %v46 = vld [vmem:[%s4 + $0x18] sm:$0xf]
    %v47 = vld [vmem:[%s4 + $0x1c] sm:$0xf]
    %v48 = vld [vmem:[%s5] sm:$0x1]
    %v49 = vld [vmem:[%s0] sm:$0xf]
    %v50 = vld [vmem:[%s0 + $0x4] sm:$0xf]
    %v52 = vlaneseq
    %v53 = vshrl.u32 %v52, 7
    %v54 = vsub.s32 0, %v53
    %v55 = vrot.slane %v39, %v54
    %v59 = vunpack.c.l.b16 %v49
    %v60 = vunpack.c.l.b16 %v50
    %v61 = vpack.c.b16 %v60, %v59
    %v64 = vunpack.c.l.b16 %v37
    %v65 = vunpack.c.l.b16 %v38
    %v66 = vpack.c.b16 %v65, %v64
    %vm68 = vcmask 130048
    %v70 = vsel %vm68, %v61, 0
    %72 = vmatprep.subr.bf16.mxu0 0
    %73 = vmatpush1.bf16.msra.mxu0 0
    %74 = vmatprep.subr.bf16.mxu0 0
    %75 = vmatpush1.bf16.msra.mxu0 0
    %76 = vmatprep.subr.bf16.mxu0 0
    %77 = vmatpush1.bf16.msra.mxu0 0
    %78 = vmatprep.subr.bf16.mxu0 0
    %79 = vmatpush1.bf16.msra.mxu0 0
    %80 = vmatprep.subr.bf16.mxu0 0
    %81 = vmatpush1.bf16.msra.mxu0 0
    %82 = vmatprep.subr.bf16.mxu0 0
    %83 = vmatpush1.bf16.msra.mxu0 0
    %84 = vmatprep.subr.bf16.mxu0 0
    %85 = vmatpush1.bf16.msra.mxu0 0
    %86 = vmatprep.subr.bf16.mxu0 0
    %87 = vmatpush1.bf16.msra.mxu0 %v66
    %88 = vmatprep.subr.bf16.mxu0 0
    %89 = vmatpush2.bf16.msra.mxu0 0
    %90 = vmatprep.subr.bf16.mxu0 0
    %91 = vmatpush2.bf16.msra.mxu0 0
    %92 = vmatprep.subr.bf16.mxu0 0
    %93 = vmatpush2.bf16.msra.mxu0 0
    %94 = vmatprep.subr.bf16.mxu0 0
    %95 = vmatpush2.bf16.msra.mxu0 0
    %96 = vmatprep.subr.bf16.mxu0 0
    %97 = vmatpush2.bf16.msra.mxu0 0
    %98 = vmatprep.subr.bf16.mxu0 0
    %99 = vmatpush2.bf16.msra.mxu0 0
    %100 = vmatprep.subr.bf16.mxu0 0
    %101 = vmatpush2.bf16.msra.mxu0 0
    %102 = vmatprep.subr.bf16.mxu0 0
    %103 = vmatpush2.bf16.msra.mxu0 0
    %104 = vmatprep.mubr.bf16.mxu0 0
    %105 = vmatmul.mubr.bf16.gmra.mxu0 %v70
    %v106 = vpop.f32.mrf.mxu0
    %v107 = vadd.f32 %v55, %v106
    %v108 = vpop.f32.mrf.mxu0
    %v109 = vpop.f32.mrf.mxu0
    %v110 = vadd.f32 %v55, %v109
    %v111 = vpop.f32.mrf.mxu0
    %112 = vdwg.mxu0
    %v113 = vmax.f32 %v107, 0.0
    %v114 = vmax.f32 %v110, 0.0
    %s115 = scalar_lea.vmem %s0, 8
    %v116 = vld [vmem:[%s115] sm:$0xf]
    %v117 = vld [vmem:[%s115 + $0x4] sm:$0xf]
    %v120 = vunpack.c.l.b16 %v116
    %v121 = vunpack.c.l.b16 %v117
    %v122 = vpack.c.b16 %v121, %v120
    %v124 = vsel %vm68, %v122, 0
    %126 = vmatprep.subr.bf16.mxu0 0
    %127 = vmatpush1.bf16.msra.mxu0 0
    %128 = vmatprep.subr.bf16.mxu0 0
    %129 = vmatpush1.bf16.msra.mxu0 0
    %130 = vmatprep.subr.bf16.mxu0 0
    %131 = vmatpush1.bf16.msra.mxu0 0
    %132 = vmatprep.subr.bf16.mxu0 0
    %133 = vmatpush1.bf16.msra.mxu0 0
    %134 = vmatprep.subr.bf16.mxu0 0
    %135 = vmatpush1.bf16.msra.mxu0 0
    %136 = vmatprep.subr.bf16.mxu0 0
    %137 = vmatpush1.bf16.msra.mxu0 0
    %138 = vmatprep.subr.bf16.mxu0 0
    %139 = vmatpush1.bf16.msra.mxu0 0
    %140 = vmatprep.subr.bf16.mxu0 0
    %141 = vmatpush1.bf16.msra.mxu0 %v66
    %142 = vmatprep.subr.bf16.mxu0 0
    %143 = vmatpush2.bf16.msra.mxu0 0
    %144 = vmatprep.subr.bf16.mxu0 0
    %145 = vmatpush2.bf16.msra.mxu0 0
    %146 = vmatprep.subr.bf16.mxu0 0
    %147 = vmatpush2.bf16.msra.mxu0 0
    %148 = vmatprep.subr.bf16.mxu0 0
    %149 = vmatpush2.bf16.msra.mxu0 0
    %150 = vmatprep.subr.bf16.mxu0 0
    %151 = vmatpush2.bf16.msra.mxu0 0
    %152 = vmatprep.subr.bf16.mxu0 0
    %153 = vmatpush2.bf16.msra.mxu0 0
    %154 = vmatprep.subr.bf16.mxu0 0
    %155 = vmatpush2.bf16.msra.mxu0 0
    %156 = vmatprep.subr.bf16.mxu0 0
    %157 = vmatpush2.bf16.msra.mxu0 0
    %158 = vmatprep.mubr.bf16.mxu0 0
    %159 = vmatmul.mubr.bf16.gmra.mxu0 %v124
    %v160 = vpop.f32.mrf.mxu0
    %v161 = vadd.f32 %v55, %v160
    %v162 = vpop.f32.mrf.mxu0
    %v163 = vpop.f32.mrf.mxu0
    %v164 = vadd.f32 %v55, %v163
    %v165 = vpop.f32.mrf.mxu0
    %166 = vdwg.mxu0
    %v167 = vmax.f32 %v161, 0.0
    %v168 = vmax.f32 %v164, 0.0
    %s169 = scalar_lea.vmem %s0, 16
    %v170 = vld [vmem:[%s169] sm:$0xf]
    %v171 = vld [vmem:[%s169 + $0x4] sm:$0xf]
    %v174 = vunpack.c.l.b16 %v170
    %v175 = vunpack.c.l.b16 %v171
    %v176 = vpack.c.b16 %v175, %v174
    %v178 = vsel %vm68, %v176, 0
    %180 = vmatprep.subr.bf16.mxu0 0
    %181 = vmatpush1.bf16.msra.mxu0 0
    %182 = vmatprep.subr.bf16.mxu0 0
    %183 = vmatpush1.bf16.msra.mxu0 0
    %184 = vmatprep.subr.bf16.mxu0 0
    %185 = vmatpush1.bf16.msra.mxu0 0
    %186 = vmatprep.subr.bf16.mxu0 0
    %187 = vmatpush1.bf16.msra.mxu0 0
    %188 = vmatprep.subr.bf16.mxu0 0
    %189 = vmatpush1.bf16.msra.mxu0 0
    %190 = vmatprep.subr.bf16.mxu0 0
    %191 = vmatpush1.bf16.msra.mxu0 0
    %192 = vmatprep.subr.bf16.mxu0 0
    %193 = vmatpush1.bf16.msra.mxu0 0
    %194 = vmatprep.subr.bf16.mxu0 0
    %195 = vmatpush1.bf16.msra.mxu0 %v66
    %196 = vmatprep.subr.bf16.mxu0 0
    %197 = vmatpush2.bf16.msra.mxu0 0
    %198 = vmatprep.subr.bf16.mxu0 0
    %199 = vmatpush2.bf16.msra.mxu0 0
    %200 = vmatprep.subr.bf16.mxu0 0
    %201 = vmatpush2.bf16.msra.mxu0 0
    %202 = vmatprep.subr.bf16.mxu0 0
    %203 = vmatpush2.bf16.msra.mxu0 0
    %204 = vmatprep.subr.bf16.mxu0 0
    %205 = vmatpush2.bf16.msra.mxu0 0
    %206 = vmatprep.subr.bf16.mxu0 0
    %207 = vmatpush2.bf16.msra.mxu0 0
    %208 = vmatprep.subr.bf16.mxu0 0
    %209 = vmatpush2.bf16.msra.mxu0 0
    %210 = vmatprep.subr.bf16.mxu0 0
    %211 = vmatpush2.bf16.msra.mxu0 0
    %212 = vmatprep.mubr.bf16.mxu0 0
    %213 = vmatmul.mubr.bf16.gmra.mxu0 %v178
    %v214 = vpop.f32.mrf.mxu0
    %v215 = vadd.f32 %v55, %v214
    %v216 = vpop.f32.mrf.mxu0
    %v217 = vpop.f32.mrf.mxu0
    %v218 = vadd.f32 %v55, %v217
    %v219 = vpop.f32.mrf.mxu0
    %220 = vdwg.mxu0
    %v221 = vmax.f32 %v215, 0.0
    %v222 = vmax.f32 %v218, 0.0
    %s223 = scalar_lea.vmem %s0, 24
    %v224 = vld [vmem:[%s223] sm:$0xf]
    %v225 = vld [vmem:[%s223 + $0x4] sm:$0xf]
    %v228 = vunpack.c.l.b16 %v224
    %v229 = vunpack.c.l.b16 %v225
    %v230 = vpack.c.b16 %v229, %v228
    %v232 = vsel %vm68, %v230, 0
    %234 = vmatprep.subr.bf16.mxu0 0
    %235 = vmatpush1.bf16.msra.mxu0 0
    %236 = vmatprep.subr.bf16.mxu0 0
    %237 = vmatpush1.bf16.msra.mxu0 0
    %238 = vmatprep.subr.bf16.mxu0 0
    %239 = vmatpush1.bf16.msra.mxu0 0
    %240 = vmatprep.subr.bf16.mxu0 0
    %241 = vmatpush1.bf16.msra.mxu0 0
    %242 = vmatprep.subr.bf16.mxu0 0
    %243 = vmatpush1.bf16.msra.mxu0 0
    %244 = vmatprep.subr.bf16.mxu0 0
    %245 = vmatpush1.bf16.msra.mxu0 0
    %246 = vmatprep.subr.bf16.mxu0 0
    %247 = vmatpush1.bf16.msra.mxu0 0
    %248 = vmatprep.subr.bf16.mxu0 0
    %249 = vmatpush1.bf16.msra.mxu0 %v66
    %250 = vmatprep.subr.bf16.mxu0 0
    %251 = vmatpush2.bf16.msra.mxu0 0
    %252 = vmatprep.subr.bf16.mxu0 0
    %253 = vmatpush2.bf16.msra.mxu0 0
    %254 = vmatprep.subr.bf16.mxu0 0
    %255 = vmatpush2.bf16.msra.mxu0 0
    %256 = vmatprep.subr.bf16.mxu0 0
    %257 = vmatpush2.bf16.msra.mxu0 0
    %258 = vmatprep.subr.bf16.mxu0 0
    %259 = vmatpush2.bf16.msra.mxu0 0
    %260 = vmatprep.subr.bf16.mxu0 0
    %261 = vmatpush2.bf16.msra.mxu0 0
    %262 = vmatprep.subr.bf16.mxu0 0
    %263 = vmatpush2.bf16.msra.mxu0 0
    %264 = vmatprep.subr.bf16.mxu0 0
    %265 = vmatpush2.bf16.msra.mxu0 0
    %266 = vmatprep.mubr.bf16.mxu0 0
    %267 = vmatmul.mubr.bf16.gmra.mxu0 %v232
    %v268 = vpop.f32.mrf.mxu0
    %v269 = vadd.f32 %v55, %v268
    %v270 = vpop.f32.mrf.mxu0
    %v271 = vpop.f32.mrf.mxu0
    %v272 = vadd.f32 %v55, %v271
    %v273 = vpop.f32.mrf.mxu0
    %274 = vdwg.mxu0
    %v275 = vmax.f32 %v269, 0.0
    %v276 = vmax.f32 %v272, 0.0
    %s277 = sld [smem:[#allocation2]]
    %v278 = vstv %s277
    %v279 = vmul.f32 %v278, %v113
    %v280 = vmul.f32 %v278, %v114
    %s281 = sld [smem:[#allocation2 + $0x1]]
    %v282 = vstv %s281
    %v283 = vmul.f32 %v282, %v167
    %v284 = vmul.f32 %v282, %v168
    %v285 = vadd.f32 %v279, %v283
    %v286 = vadd.f32 %v280, %v284
    %s287 = sld [smem:[#allocation2 + $0x2]]
    %v288 = vstv %s287
    %v289 = vmul.f32 %v288, %v221
    %v290 = vmul.f32 %v288, %v222
    %v291 = vadd.f32 %v285, %v289
    %v292 = vadd.f32 %v286, %v290
    %s293 = sld [smem:[#allocation2 + $0x3]]
    %v294 = vstv %s293
    %v295 = vmul.f32 %v294, %v275
    %v296 = vmul.f32 %v294, %v276
    %v297 = vadd.f32 %v291, %v295
    %v298 = vadd.f32 %v292, %v296
    %v299 = vtanh.pop %v297
    %v300 = vtanh.pop %v298
    %v301 = vpack.c.bf16 %v300, %v299
    %v303 = vlaneseq
    %v304 = vshrl.u32 %v303, 7
    %v305 = vsub.s32 0, %v304
    %v306 = vrot.slane %v48, %v305
    %v316 = vunpack.c.l.b16 %v40
    %v317 = vunpack.c.l.b16 %v41
    %v318 = vunpack.c.l.b16 %v42
    %v319 = vunpack.c.l.b16 %v43
    %v320 = vunpack.c.l.b16 %v44
    %v321 = vunpack.c.l.b16 %v45
    %v322 = vunpack.c.l.b16 %v46
    %v323 = vunpack.c.l.b16 %v47
    %v324 = vpack.c.b16 %v317, %v316
    %v325 = vpack.c.b16 %v319, %v318
    %v326 = vpack.c.b16 %v321, %v320
    %v327 = vpack.c.b16 %v323, %v322
    %vm332 = vcmask 523264
    %v334 = vsel %vm332, %v301, 0
    %336 = vmatprep.subr.bf16.mxu0 0
    %337 = vmatpush1.bf16.msra.mxu0 0
    %338 = vmatprep.subr.bf16.mxu0 0
    %339 = vmatpush1.bf16.msra.mxu0 0
    %340 = vmatprep.subr.bf16.mxu0 0
    %341 = vmatpush1.bf16.msra.mxu0 0
    %342 = vmatprep.subr.bf16.mxu0 0
    %343 = vmatpush1.bf16.msra.mxu0 0
    %344 = vmatprep.subr.bf16.mxu0 0
    %345 = vmatpush1.bf16.msra.mxu0 %v327
    %346 = vmatprep.subr.bf16.mxu0 0
    %347 = vmatpush1.bf16.msra.mxu0 %v326
    %348 = vmatprep.subr.bf16.mxu0 0
    %349 = vmatpush1.bf16.msra.mxu0 %v325
    %350 = vmatprep.subr.bf16.mxu0 0
    %351 = vmatpush1.bf16.msra.mxu0 %v324
    %352 = vmatprep.subr.bf16.mxu0 0
    %353 = vmatpush2.bf16.msra.mxu0 0
    %354 = vmatprep.subr.bf16.mxu0 0
    %355 = vmatpush2.bf16.msra.mxu0 0
    %356 = vmatprep.subr.bf16.mxu0 0
    %357 = vmatpush2.bf16.msra.mxu0 0
    %358 = vmatprep.subr.bf16.mxu0 0
    %359 = vmatpush2.bf16.msra.mxu0 0
    %360 = vmatprep.subr.bf16.mxu0 0
    %361 = vmatpush2.bf16.msra.mxu0 0
    %362 = vmatprep.subr.bf16.mxu0 0
    %363 = vmatpush2.bf16.msra.mxu0 0
    %364 = vmatprep.subr.bf16.mxu0 0
    %365 = vmatpush2.bf16.msra.mxu0 0
    %366 = vmatprep.subr.bf16.mxu0 0
    %367 = vmatpush2.bf16.msra.mxu0 0
    %368 = vmatprep.mubr.bf16.mxu0 0
    %369 = vmatmul.mubr.bf16.gmra.mxu0 %v334
    %v370 = vpop.f32.mrf.mxu0
    %v371 = vadd.f32 %v306, %v370
    %v372 = vpop.f32.mrf.mxu0
    %v373 = vpop.f32.mrf.mxu0
    %v374 = vadd.f32 %v306, %v373
    %v375 = vpop.f32.mrf.mxu0
    %376 = vdwg.mxu0
    %377 = vst [vmem:[%s6] sm:$0xff] %v371
    %378 = vst [vmem:[%s6 + $0x8] sm:$0xff] %v374
    %s379 = sld [smem:[#allocation2 + $0x80]]
    %v380 = vstv %s379
    %v381 = vmul.f32 %v380, %v113
    %v382 = vmul.f32 %v380, %v114
    %s383 = sld [smem:[#allocation2 + $0x81]]
    %v384 = vstv %s383
    %v385 = vmul.f32 %v384, %v167
    %v386 = vmul.f32 %v384, %v168
    %v387 = vadd.f32 %v381, %v385
    %v388 = vadd.f32 %v382, %v386
    %s389 = sld [smem:[#allocation2 + $0x82]]
    %v390 = vstv %s389
    %v391 = vmul.f32 %v390, %v221
    %v392 = vmul.f32 %v390, %v222
    %v393 = vadd.f32 %v387, %v391
    %v394 = vadd.f32 %v388, %v392
    %s395 = sld [smem:[#allocation2 + $0x83]]
    %v396 = vstv %s395
    %v397 = vmul.f32 %v396, %v275
    %v398 = vmul.f32 %v396, %v276
    %v399 = vadd.f32 %v393, %v397
    %v400 = vadd.f32 %v394, %v398
    %v401 = vtanh.pop %v399
    %v402 = vtanh.pop %v400
    %v403 = vpack.c.bf16 %v402, %v401
    %v405 = vsel %vm332, %v403, 0
    %407 = vmatprep.subr.bf16.mxu0 0
    %408 = vmatpush1.bf16.msra.mxu0 0
    %409 = vmatprep.subr.bf16.mxu0 0
    %410 = vmatpush1.bf16.msra.mxu0 0
    %411 = vmatprep.subr.bf16.mxu0 0
    %412 = vmatpush1.bf16.msra.mxu0 0
    %413 = vmatprep.subr.bf16.mxu0 0
    %414 = vmatpush1.bf16.msra.mxu0 0
    %415 = vmatprep.subr.bf16.mxu0 0
    %416 = vmatpush1.bf16.msra.mxu0 %v327
    %417 = vmatprep.subr.bf16.mxu0 0
    %418 = vmatpush1.bf16.msra.mxu0 %v326
    %419 = vmatprep.subr.bf16.mxu0 0
    %420 = vmatpush1.bf16.msra.mxu0 %v325
    %421 = vmatprep.subr.bf16.mxu0 0
    %422 = vmatpush1.bf16.msra.mxu0 %v324
    %423 = vmatprep.subr.bf16.mxu0 0
    %424 = vmatpush2.bf16.msra.mxu0 0
    %425 = vmatprep.subr.bf16.mxu0 0
    %426 = vmatpush2.bf16.msra.mxu0 0
    %427 = vmatprep.subr.bf16.mxu0 0
    %428 = vmatpush2.bf16.msra.mxu0 0
    %429 = vmatprep.subr.bf16.mxu0 0
    %430 = vmatpush2.bf16.msra.mxu0 0
    %431 = vmatprep.subr.bf16.mxu0 0
    %432 = vmatpush2.bf16.msra.mxu0 0
    %433 = vmatprep.subr.bf16.mxu0 0
    %434 = vmatpush2.bf16.msra.mxu0 0
    %435 = vmatprep.subr.bf16.mxu0 0
    %436 = vmatpush2.bf16.msra.mxu0 0
    %437 = vmatprep.subr.bf16.mxu0 0
    %438 = vmatpush2.bf16.msra.mxu0 0
    %439 = vmatprep.mubr.bf16.mxu0 0
    %440 = vmatmul.mubr.bf16.gmra.mxu0 %v405
    %v441 = vpop.f32.mrf.mxu0
    %v442 = vadd.f32 %v306, %v441
    %v443 = vpop.f32.mrf.mxu0
    %v444 = vpop.f32.mrf.mxu0
    %v445 = vadd.f32 %v306, %v444
    %v446 = vpop.f32.mrf.mxu0
    %447 = vdwg.mxu0
    %s448 = scalar_lea.vmem %s6, 16
    %449 = vst [vmem:[%s448] sm:$0xff] %v442
    %450 = vst [vmem:[%s448 + $0x8] sm:$0xff] %v445
    %s451 = sld [smem:[#allocation2 + $0x100]]
    %v452 = vstv %s451
    %v453 = vmul.f32 %v452, %v113
    %v454 = vmul.f32 %v452, %v114
    %s455 = sld [smem:[#allocation2 + $0x101]]
    %v456 = vstv %s455
    %v457 = vmul.f32 %v456, %v167
    %v458 = vmul.f32 %v456, %v168
    %v459 = vadd.f32 %v453, %v457
    %v460 = vadd.f32 %v454, %v458
    %s461 = sld [smem:[#allocation2 + $0x102]]
    %v462 = vstv %s461
    %v463 = vmul.f32 %v462, %v221
    %v464 = vmul.f32 %v462, %v222
    %v465 = vadd.f32 %v459, %v463
    %v466 = vadd.f32 %v460, %v464
    %s467 = sld [smem:[#allocation2 + $0x103]]
    %v468 = vstv %s467
    %v469 = vmul.f32 %v468, %v275
    %v470 = vmul.f32 %v468, %v276
    %v471 = vadd.f32 %v465, %v469
    %v472 = vadd.f32 %v466, %v470
    %v473 = vtanh.pop %v471
    %v474 = vtanh.pop %v472
    %v475 = vpack.c.bf16 %v474, %v473
    %v477 = vsel %vm332, %v475, 0
    %479 = vmatprep.subr.bf16.mxu0 0
    %480 = vmatpush1.bf16.msra.mxu0 0
    %481 = vmatprep.subr.bf16.mxu0 0
    %482 = vmatpush1.bf16.msra.mxu0 0
    %483 = vmatprep.subr.bf16.mxu0 0
    %484 = vmatpush1.bf16.msra.mxu0 0
    %485 = vmatprep.subr.bf16.mxu0 0
    %486 = vmatpush1.bf16.msra.mxu0 0
    %487 = vmatprep.subr.bf16.mxu0 0
    %488 = vmatpush1.bf16.msra.mxu0 %v327
    %489 = vmatprep.subr.bf16.mxu0 0
    %490 = vmatpush1.bf16.msra.mxu0 %v326
    %491 = vmatprep.subr.bf16.mxu0 0
    %492 = vmatpush1.bf16.msra.mxu0 %v325
    %493 = vmatprep.subr.bf16.mxu0 0
    %494 = vmatpush1.bf16.msra.mxu0 %v324
    %495 = vmatprep.subr.bf16.mxu0 0
    %496 = vmatpush2.bf16.msra.mxu0 0
    %497 = vmatprep.subr.bf16.mxu0 0
    %498 = vmatpush2.bf16.msra.mxu0 0
    %499 = vmatprep.subr.bf16.mxu0 0
    %500 = vmatpush2.bf16.msra.mxu0 0
    %501 = vmatprep.subr.bf16.mxu0 0
    %502 = vmatpush2.bf16.msra.mxu0 0
    %503 = vmatprep.subr.bf16.mxu0 0
    %504 = vmatpush2.bf16.msra.mxu0 0
    %505 = vmatprep.subr.bf16.mxu0 0
    %506 = vmatpush2.bf16.msra.mxu0 0
    %507 = vmatprep.subr.bf16.mxu0 0
    %508 = vmatpush2.bf16.msra.mxu0 0
    %509 = vmatprep.subr.bf16.mxu0 0
    %510 = vmatpush2.bf16.msra.mxu0 0
    %511 = vmatprep.mubr.bf16.mxu0 0
    %512 = vmatmul.mubr.bf16.gmra.mxu0 %v477
    %v513 = vpop.f32.mrf.mxu0
    %v514 = vadd.f32 %v306, %v513
    %v515 = vpop.f32.mrf.mxu0
    %v516 = vpop.f32.mrf.mxu0
    %v517 = vadd.f32 %v306, %v516
    %v518 = vpop.f32.mrf.mxu0
    %519 = vdwg.mxu0
    %s520 = scalar_lea.vmem %s6, 32
    %521 = vst [vmem:[%s520] sm:$0xff] %v514
    %522 = vst [vmem:[%s520 + $0x8] sm:$0xff] %v517
    %s523 = sld [smem:[#allocation2 + $0x180]]
    %v524 = vstv %s523
    %v525 = vmul.f32 %v524, %v113
    %v526 = vmul.f32 %v524, %v114
    %s527 = sld [smem:[#allocation2 + $0x181]]
    %v528 = vstv %s527
    %v529 = vmul.f32 %v528, %v167
    %v530 = vmul.f32 %v528, %v168
    %v531 = vadd.f32 %v525, %v529
    %v532 = vadd.f32 %v526, %v530
    %s533 = sld [smem:[#allocation2 + $0x182]]
    %v534 = vstv %s533
    %v535 = vmul.f32 %v534, %v221
    %v536 = vmul.f32 %v534, %v222
    %v537 = vadd.f32 %v531, %v535
    %v538 = vadd.f32 %v532, %v536
    %s539 = sld [smem:[#allocation2 + $0x183]]
    %v540 = vstv %s539
    %v541 = vmul.f32 %v540, %v275
    %v542 = vmul.f32 %v540, %v276
    %v543 = vadd.f32 %v537, %v541
    %v544 = vadd.f32 %v538, %v542
    %v545 = vtanh.pop %v543
    %v546 = vtanh.pop %v544
    %v547 = vpack.c.bf16 %v546, %v545
    %v549 = vsel %vm332, %v547, 0
    %551 = vmatprep.subr.bf16.mxu0 0
    %552 = vmatpush1.bf16.msra.mxu0 0
    %553 = vmatprep.subr.bf16.mxu0 0
    %554 = vmatpush1.bf16.msra.mxu0 0
    %555 = vmatprep.subr.bf16.mxu0 0
    %556 = vmatpush1.bf16.msra.mxu0 0
    %557 = vmatprep.subr.bf16.mxu0 0
    %558 = vmatpush1.bf16.msra.mxu0 0
    %559 = vmatprep.subr.bf16.mxu0 0
    %560 = vmatpush1.bf16.msra.mxu0 %v327
    %561 = vmatprep.subr.bf16.mxu0 0
    %562 = vmatpush1.bf16.msra.mxu0 %v326
    %563 = vmatprep.subr.bf16.mxu0 0
    %564 = vmatpush1.bf16.msra.mxu0 %v325
    %565 = vmatprep.subr.bf16.mxu0 0
    %566 = vmatpush1.bf16.msra.mxu0 %v324
    %567 = vmatprep.subr.bf16.mxu0 0
    %568 = vmatpush2.bf16.msra.mxu0 0
    %569 = vmatprep.subr.bf16.mxu0 0
    %570 = vmatpush2.bf16.msra.mxu0 0
    %571 = vmatprep.subr.bf16.mxu0 0
    %572 = vmatpush2.bf16.msra.mxu0 0
    %573 = vmatprep.subr.bf16.mxu0 0
    %574 = vmatpush2.bf16.msra.mxu0 0
    %575 = vmatprep.subr.bf16.mxu0 0
    %576 = vmatpush2.bf16.msra.mxu0 0
    %577 = vmatprep.subr.bf16.mxu0 0
    %578 = vmatpush2.bf16.msra.mxu0 0
    %579 = vmatprep.subr.bf16.mxu0 0
    %580 = vmatpush2.bf16.msra.mxu0 0
    %581 = vmatprep.subr.bf16.mxu0 0
    %582 = vmatpush2.bf16.msra.mxu0 0
    %583 = vmatprep.mubr.bf16.mxu0 0
    %584 = vmatmul.mubr.bf16.gmra.mxu0 %v549
    %v585 = vpop.f32.mrf.mxu0
    %v586 = vadd.f32 %v306, %v585
    %v587 = vpop.f32.mrf.mxu0
    %v588 = vpop.f32.mrf.mxu0
    %v589 = vadd.f32 %v306, %v588
    %v590 = vpop.f32.mrf.mxu0
    %591 = vdwg.mxu0
    %s592 = scalar_lea.vmem %s6, 48
    %593 = vst [vmem:[%s592] sm:$0xff] %v586
    %594 = vst [vmem:[%s592 + $0x8] sm:$0xff] %v589
    // Predicated region
    $region30: #{commnet_forward.1} parent=1 // pred_check
      _
    $region31: #{commnet_forward.1} parent=1 // pred_check_branch
      %596 = sbr.rel (0) target = $region33
    $region32: #{commnet_forward.1} parent=1 // pred_region
      _
    $region33: #{commnet_forward.1} parent=1 // pred_fallthru
      _
    // Predicated region
    $region34: #{commnet_forward.1} parent=1 // pred_check
      _
    $region35: #{commnet_forward.1} parent=1 // pred_check_branch
      %598 = sbr.rel (0) target = $region37
    $region36: #{commnet_forward.1} parent=1 // pred_region
      _
    $region37: #{commnet_forward.1} parent=1 // pred_fallthru
      _
    %599 = vsyncpa [#allocation3], 1

</llo_original>
